<compile_context>
chip_gen: v6e
topology: v6e:2x2x1
jax: 0.10.0
libtpu: 0.0.40
codegen_flags: <defaults>
</compile_context>

<pallas_src>
import functools

import jax
import jax.numpy as jnp
from jax.experimental import pallas as pl
from jax.experimental.pallas import tpu as pltpu

DIM = 64      # ODEfunc_mlp hard-codes ConcatFC(64, 64)
PACK = 2      # 64 -> 128 lanes (full vreg lane width on all generations)


def _round_up(v, m):
    return (v + m - 1) // m * m


def odefunc_mlp_kernel(x_ref, wt_ref, b_ref, o_ref):
    # Hot path: bf16 MXU matmul (f32 accumulate) + f32 bias-add + sin (VPU poly).
    x = x_ref[...].astype(jnp.bfloat16)
    h = jnp.dot(x, wt_ref[...], preferred_element_type=jnp.float32)
    h = h + b_ref[...]                      # broadcast (1, 128) over rows, f32
    o_ref[...] = jnp.sin(h).astype(o_ref.dtype)


def pack_params(w, b):
    """One-time parameter packing (do this OUTSIDE the ODE-solver hot loop).

    w: [64, 64] f32, PyTorch nn.Linear weight (out_features, in_features)
    b: [64]    f32 bias
    Returns:
      wt_packed: [128, 128] bf16, blockdiag(-W^T, -W^T)  (negation folded in)
      b_packed : [1, 128]   f32,  -b tiled PACK times
    """
    wt = -w.T                                        # [in, out], negation folded
    z = jnp.zeros_like(wt)
    wt_packed = jnp.block([[wt, z], [z, wt]]).astype(jnp.bfloat16)   # [128, 128]
    b_packed = jnp.tile(-b, PACK).reshape(1, DIM * PACK).astype(jnp.float32)
    return wt_packed, b_packed


@functools.partial(jax.jit, static_argnames=("tile_rows",))
def odefunc_mlp(t, x, wt_packed, b_packed, *, tile_rows=8192):
    """Forward of ODEfunc_mlp: sin(-(x @ W^T + b)) with pre-packed params.

    t: scalar time (unused; ConcatFC ignores it — kept for API parity)
    x: [N, 64] float32 (or bfloat16 if the solver keeps a bf16 state)
    """
    del t  # ConcatFC ignores t
    N, D = x.shape
    DP = D * PACK                               # 128 lanes

    # At most one pad: only when N is odd (needed for the 64->128 lane packing).
    n_pad = (-N) % PACK
    if n_pad:
        x = jnp.pad(x, ((0, n_pad), (0, 0)))
    n_packed = (N + n_pad) // PACK
    xp = x.reshape(n_packed, DP)                # zero-copy row-major view

    # Row-tile size:
    #  * tiny batches: one full-array block (always a legal block shape);
    #  * otherwise: >= 2 grid steps (v7x megacore), sublane-aligned (x8),
    #    capped at tile_rows.  No padding: the grid uses cdiv and Pallas masks
    #    the overhanging last block (row-wise op => garbage rows never leak).
    if n_packed <= 8:
        tn = n_packed
    else:
        tn = _round_up(min(tile_rows, pl.cdiv(n_packed, 2)), 8)
    grid = (pl.cdiv(n_packed, tn),)

    out = pl.pallas_call(
        odefunc_mlp_kernel,
        out_shape=jax.ShapeDtypeStruct((n_packed, DP), x.dtype),
        grid_spec=pltpu.PrefetchScalarGridSpec(
            num_scalar_prefetch=0,
            grid=grid,
            in_specs=[
                pl.BlockSpec((tn, DP), lambda i: (i, 0)),   # x tile, pipelined
                pl.BlockSpec((DP, DP), lambda i: (0, 0)),   # weight, VMEM-resident
                pl.BlockSpec((1, DP), lambda i: (0, 0)),    # bias, VMEM-resident
            ],
            out_specs=pl.BlockSpec((tn, DP), lambda i: (i, 0)),
        ),
        compiler_params=pltpu.CompilerParams(
            dimension_semantics=("parallel",),   # shard row tiles across TCs on v7x
            vmem_limit_bytes=32 * 1024 * 1024,   # 8192-row f32 tiles fit on v5e too
        ),
    )(xp, wt_packed, b_packed)

    # Undo lane packing; slice only if we actually padded (odd N).
    out_full = out.reshape(n_packed * PACK, D)
    return out_full[:N] if n_pad else out_full


if __name__ == "__main__":
    key = jax.random.PRNGKey(0)
    k_x, k_w, k_b, k_x2 = jax.random.split(key, 4)

    N = 8  # small demo batch

    # Deterministic parameter init matching nn.Linear's uniform(-1/sqrt(fan_in), ...)
    bound = 1.0 / (DIM ** 0.5)
    w = jax.random.uniform(k_w, (DIM, DIM), jnp.float32, -bound, bound)
    b = jax.random.uniform(k_b, (DIM,), jnp.float32, -bound, bound)
    x = jax.random.normal(k_x, (N, DIM), jnp.float32)
    t = jnp.float32(0.0)

    # One-time packing outside the hot path (ODE solvers call the func many times).
    wt_packed, b_packed = pack_params(w, b)
    wt_packed, b_packed = jax.block_until_ready((wt_packed, b_packed))

    out = odefunc_mlp(t, x, wt_packed, b_packed)
    out = jax.block_until_ready(out)
    assert out.shape == (N, DIM)

    # Reference checks.
    ref_f32 = jnp.sin(-(x @ w.T + b))
    ref_bf16 = jnp.sin(
        -(jnp.dot(x.astype(jnp.bfloat16), w.T.astype(jnp.bfloat16),
                  preferred_element_type=jnp.float32) + b))
    # Tight match against bf16-operand reference, loose vs pure-f32 reference
    # (bf16 MXU operands are the intended perf trade-off; an adaptive-step solver
    #  must own this ~1e-2 relative error in its tolerance budget).
    assert jnp.allclose(out, ref_bf16, atol=1e-5, rtol=1e-3), "bf16-ref mismatch"
    assert jnp.allclose(out, ref_f32, atol=2e-2, rtol=0.0), "f32-ref mismatch"

    # Also exercise the odd-N pack-pad, the multi-step grid, and the
    # non-divisible (overhanging, masked) last block — no tile padding anywhere.
    N2 = 1001
    x2 = jax.random.normal(k_x2, (N2, DIM), jnp.float32)
    out2 = jax.block_until_ready(odefunc_mlp(t, x2, wt_packed, b_packed, tile_rows=128))
    ref2 = jnp.sin(-(x2 @ w.T + b))
    assert out2.shape == (N2, DIM)
    assert jnp.allclose(out2, ref2, atol=2e-2, rtol=0.0), "tiled-path mismatch"

    print("KERNEL_OK")
</pallas_src>

<mosaic_0001>
module attributes {stable_mosaic.version = 11 : i64} {
  func.func @odefunc_mlp_kernel(%arg0: i32, %arg1: memref<4x128xf32, #tpu.memory_space<vmem>>, %arg2: memref<128x128xbf16, #tpu.memory_space<vmem>>, %arg3: memref<1x128xf32, #tpu.memory_space<vmem>>, %arg4: memref<4x128xf32, #tpu.memory_space<vmem>>) attributes {dimension_semantics = [#tpu.dimension_semantics<parallel>], iteration_bounds = array<i64: 1>, scalar_prefetch = 0 : i64, scratch_operands = 0 : i64, tpu.core_type = #tpu.core_type<tc>, window_params = [{transform_indices = @transform_0, window_bounds = array<i64: 4, 128>}, {pipeline_mode = #tpu.pipeline_mode<synchronous>, transform_indices = @transform_1, window_bounds = array<i64: 128, 128>}, {pipeline_mode = #tpu.pipeline_mode<synchronous>, transform_indices = @transform_2, window_bounds = array<i64: 1, 128>}, {transform_indices = @transform_3, window_bounds = array<i64: 4, 128>}]} {
    %c0 = arith.constant 0 : index
    %c0_0 = arith.constant 0 : index
    %0 = vector.load %arg1[%c0, %c0_0] : memref<4x128xf32, #tpu.memory_space<vmem>>, vector<4x128xf32>
    %1 = arith.truncf %0 : vector<4x128xf32> to vector<4x128xbf16>
    %c0_1 = arith.constant 0 : index
    %c0_2 = arith.constant 0 : index
    %2 = vector.load %arg2[%c0_1, %c0_2] : memref<128x128xbf16, #tpu.memory_space<vmem>>, vector<128x128xbf16>
    %cst = arith.constant dense<0.000000e+00> : vector<4x128xf32>
    %3 = tpu.matmul %1, %2, %cst {dimension_numbers = #tpu.dot_dimension_numbers<[1], [0], [0], [1], [0, 0, 1, 1], [], []>} : vector<4x128xbf16>, vector<128x128xbf16>, vector<4x128xf32> -> vector<4x128xf32>
    %c0_3 = arith.constant 0 : index
    %c0_4 = arith.constant 0 : index
    %4 = vector.load %arg3[%c0_3, %c0_4] : memref<1x128xf32, #tpu.memory_space<vmem>>, vector<1x128xf32>
    %5 = vector.broadcast %4 : vector<1x128xf32> to vector<4x128xf32>
    %6 = arith.addf %3, %5 : vector<4x128xf32>
    %7 = math.sin %6 : vector<4x128xf32>
    %c0_5 = arith.constant 0 : index
    %c0_6 = arith.constant 0 : index
    %8 = vector.load %arg4[%c0_5, %c0_6] : memref<4x128xf32, #tpu.memory_space<vmem>>, vector<4x128xf32>
    tpu.vector_store %arg4[%c0_5, %c0_6], %7 {strides = array<i32>} : memref<4x128xf32, #tpu.memory_space<vmem>>, vector<4x128xf32>,
    return
  }
  func.func @transform_0(%arg0: i32) -> (i32, i32) {
    %c0_i32 = arith.constant 0 : i32
    %c0_i32_0 = arith.constant 0 : i32
    return %arg0, %c0_i32 : i32, i32
  }
  func.func @transform_1(%arg0: i32) -> (i32, i32) {
    %c0_i32 = arith.constant 0 : i32
    %c0_i32_0 = arith.constant 0 : i32
    %c0_i32_1 = arith.constant 0 : i32
    return %c0_i32, %c0_i32_0 : i32, i32
  }
  func.func @transform_2(%arg0: i32) -> (i32, i32) {
    %c0_i32 = arith.constant 0 : i32
    %c0_i32_0 = arith.constant 0 : i32
    %c0_i32_1 = arith.constant 0 : i32
    return %c0_i32, %c0_i32_0 : i32, i32
  }
  func.func @transform_3(%arg0: i32) -> (i32, i32) {
    %c0_i32 = arith.constant 0 : i32
    %c0_i32_0 = arith.constant 0 : i32
    return %arg0, %c0_i32 : i32, i32
  }
}

</mosaic_0001>

<llo_original>
// kernel: odefunc_mlp.1
$region0: #{odefunc_mlp.1}
  #allocation0 [shape = 'u32[]', space=smem, size = 0x4, offset = 0x4, fixed_abs, tag = 'smem constant byte address 0x4 - core index']
  #allocation1 [shape = 'u32[144,128]{1,0:T(1,128)}', space=vmem, size = 0x12000, scoped, tag = 'internal scratch']
  %s0 = inlined_call_operand.vmem [shape: f32[4,128], index: 0, kind: input, shape index: {}]
  %s1 = inlined_call_operand.hbm [shape: bf16[128,128], index: 1, kind: input, shape index: {}]
  %s2 = inlined_call_operand.vmem [shape: f32[1,128], index: 2, kind: input, shape index: {}]
  %s3 = inlined_call_operand.vmem [shape: f32[4,128], index: 3, kind: output, shape index: {}]
  %s4 = sld [smem:[#allocation0]]
  $region26: #{odefunc_mlp.1} parent=0
    _
  %s6 = ssub.s32 1, %s4
  %s7 = scalar_select 0, %s6, %s4
  $region1: #{odefunc_mlp.1} parent=0
    #allocation2 [shape = 'u8[32768]{0}', space=vmem, size = 0x8000, scoped, tag = 'input window, operand 1, single buffered']
    #allocation3 [shape = 's32[1]{0}', space=sflag, size = 0x4, scoped, tag = 'scoped memory for odefunc_mlp.1']
    %8 = vsyncpa [#allocation3], 0
    // Predicated region
    $region2: #{odefunc_mlp.1} parent=1 // pred_check
      _
    $region3: #{odefunc_mlp.1} parent=1 // pred_check_branch
      %10 = sbr.rel (0) target = $region5
    $region4: #{odefunc_mlp.1} parent=1 // pred_region
      _
    $region5: #{odefunc_mlp.1} parent=1 // pred_fallthru
      _
    // Predicated region
    $region6: #{odefunc_mlp.1} parent=1 // pred_check
      _
    $region7: #{odefunc_mlp.1} parent=1 // pred_check_branch
      %12 = sbr.rel (0) target = $region9
    $region8: #{odefunc_mlp.1} parent=1 // pred_region
      %s14 = ssub.s32 1024, 1024
      %15 = vsyncadd [#allocation3], %s14
      %s16 = sshll.u32 [#allocation2], 4
      %s17 = int_to_ptr.vmem [resolvable:$true] %s16
      %22 = dma.hbm_to_vmem [thread:$0]  %s1, 1024, %s17, [#allocation3], 64, 64, 4
    $region9: #{odefunc_mlp.1} parent=1 // pred_fallthru
      _
    // Predicated region
    $region10: #{odefunc_mlp.1} parent=1 // pred_check
      _
    $region11: #{odefunc_mlp.1} parent=1 // pred_check_branch
      %24 = sbr.rel (0) target = $region13
    $region12: #{odefunc_mlp.1} parent=1 // pred_region
      _
    $region13: #{odefunc_mlp.1} parent=1 // pred_fallthru
      _
    // Predicated region
    $region14: #{odefunc_mlp.1} parent=1 // pred_check
      _
    $region15: #{odefunc_mlp.1} parent=1 // pred_check_branch
      %26 = sbr.rel (0) target = $region17
    $region16: #{odefunc_mlp.1} parent=1 // pred_region
      %27 = dma.done [#allocation3], 1024
    $region17: #{odefunc_mlp.1} parent=1 // pred_fallthru
      _
    %v29 = vld [vmem:[%s0] sm:$0xf]
    %v30 = vpack.c.bf16 %v29, %v29
    %v31 = vld [vmem:[#allocation2] sm:$0xf]
    %v32 = vld [vmem:[#allocation2 + $0x4] sm:$0xf]
    %v33 = vld [vmem:[#allocation2 + $0x8] sm:$0xf]
    %v34 = vld [vmem:[#allocation2 + $0xc] sm:$0xf]
    %v35 = vld [vmem:[#allocation2 + $0x10] sm:$0xf]
    %v36 = vld [vmem:[#allocation2 + $0x14] sm:$0xf]
    %v37 = vld [vmem:[#allocation2 + $0x18] sm:$0xf]
    %v38 = vld [vmem:[#allocation2 + $0x1c] sm:$0xf]
    %v39 = vld [vmem:[#allocation2 + $0x20] sm:$0xf]
    %v40 = vld [vmem:[#allocation2 + $0x24] sm:$0xf]
    %v41 = vld [vmem:[#allocation2 + $0x28] sm:$0xf]
    %v42 = vld [vmem:[#allocation2 + $0x2c] sm:$0xf]
    %v43 = vld [vmem:[#allocation2 + $0x30] sm:$0xf]
    %v44 = vld [vmem:[#allocation2 + $0x34] sm:$0xf]
    %v45 = vld [vmem:[#allocation2 + $0x38] sm:$0xf]
    %v46 = vld [vmem:[#allocation2 + $0x3c] sm:$0xf]
    %v47 = vld [vmem:[%s2] sm:$0x1]
    %v49 = vlaneseq
    %v50 = vshrl.u32 %v49, 7
    %v51 = vsub.s32 0, %v50
    %v52 = vrot.slane %v47, %v51
    %v70 = vunpack.c.l.b16 %v31
    %v71 = vunpack.c.l.b16 %v32
    %v72 = vunpack.c.l.b16 %v33
    %v73 = vunpack.c.l.b16 %v34
    %v74 = vunpack.c.l.b16 %v35
    %v75 = vunpack.c.l.b16 %v36
    %v76 = vunpack.c.l.b16 %v37
    %v77 = vunpack.c.l.b16 %v38
    %v78 = vunpack.c.l.b16 %v39
    %v79 = vunpack.c.l.b16 %v40
    %v80 = vunpack.c.l.b16 %v41
    %v81 = vunpack.c.l.b16 %v42
    %v82 = vunpack.c.l.b16 %v43
    %v83 = vunpack.c.l.b16 %v44
    %v84 = vunpack.c.l.b16 %v45
    %v85 = vunpack.c.l.b16 %v46
    %v86 = vpack.c.b16 %v71, %v70
    %v87 = vpack.c.b16 %v73, %v72
    %v88 = vpack.c.b16 %v75, %v74
    %v89 = vpack.c.b16 %v77, %v76
    %v90 = vpack.c.b16 %v79, %v78
    %v91 = vpack.c.b16 %v81, %v80
    %v92 = vpack.c.b16 %v83, %v82
    %v93 = vpack.c.b16 %v85, %v84
    %102 = vmatprep.subr.bf16.mxu0 0
    %103 = vmatpush1.bf16.msra.mxu0 %v93
    %104 = vmatprep.subr.bf16.mxu0 0
    %105 = vmatpush1.bf16.msra.mxu0 %v92
    %106 = vmatprep.subr.bf16.mxu0 0
    %107 = vmatpush1.bf16.msra.mxu0 %v91
    %108 = vmatprep.subr.bf16.mxu0 0
    %109 = vmatpush1.bf16.msra.mxu0 %v90
    %110 = vmatprep.subr.bf16.mxu0 0
    %111 = vmatpush1.bf16.msra.mxu0 %v89
    %112 = vmatprep.subr.bf16.mxu0 0
    %113 = vmatpush1.bf16.msra.mxu0 %v88
    %114 = vmatprep.subr.bf16.mxu0 0
    %115 = vmatpush1.bf16.msra.mxu0 %v87
    %116 = vmatprep.subr.bf16.mxu0 0
    %117 = vmatpush1.bf16.msra.mxu0 %v86
    %118 = vmatprep.subr.bf16.mxu0 0
    %119 = vmatpush2.bf16.msra.mxu0 0
    %120 = vmatprep.subr.bf16.mxu0 0
    %121 = vmatpush2.bf16.msra.mxu0 0
    %122 = vmatprep.subr.bf16.mxu0 0
    %123 = vmatpush2.bf16.msra.mxu0 0
    %124 = vmatprep.subr.bf16.mxu0 0
    %125 = vmatpush2.bf16.msra.mxu0 0
    %126 = vmatprep.subr.bf16.mxu0 0
    %127 = vmatpush2.bf16.msra.mxu0 0
    %128 = vmatprep.subr.bf16.mxu0 0
    %129 = vmatpush2.bf16.msra.mxu0 0
    %130 = vmatprep.subr.bf16.mxu0 0
    %131 = vmatpush2.bf16.msra.mxu0 0
    %132 = vmatprep.subr.bf16.mxu0 0
    %133 = vmatpush2.bf16.msra.mxu0 0
    %134 = vmatprep.mubr.bf16.mxu0 0
    %135 = vmatmul.mubr.bf16.gmra.mxu0 %v30
    %v136 = vpop.f32.mrf.mxu0
    %v137 = vadd.f32 %v52, %v136
    %v138 = vpop.f32.mrf.mxu0
    %v139 = vpop.f32.mrf.mxu0
    %v140 = vpop.f32.mrf.mxu0
    %141 = vdwg.mxu0
    %v142 = vand.u32 2147483647, %v137
    %vm143 = vcmp.le.f32.partialorder %v142, 0.7853982
    %vm144 = vcmp.lt.s32.totalorder %v137, 0
    %v145 = vand.u32 %v137, 2139095040
    %v146 = vshrl.u32 %v145, 23
    %v147 = vsub.s32 %v146, 127
    %v148 = vand.u32 2147483647, %v137
    %v149 = vand.u32 %v148, 8388607
    %v150 = vor.u32 %v149, 8388608
    %v151 = vsub.s32 0, %v150
    %v152 = vadd.s32 %v147, 1
    %vm153 = vcmp.gt.s32.totalorder %v152, 0
    %v154 = vsel %vm153, %v152, 0
    %v155 = vshrl.u32 %v154, 5
    %v156 = vand.u32 %v154, 31
    %v157 = vsub.s32 32, %v156
    %v158 = vshrl.u32 683565275, %v157
    %v159 = vshll.u32 683565275, %v156
    %v160 = vshrl.u32 2475754826, %v157
    %v161 = vor.u32 %v159, %v160
    %v162 = vshll.u32 2475754826, %v156
    %v163 = vshrl.u32 2131351028, %v157
    %v164 = vor.u32 %v162, %v163
    %v165 = vshll.u32 2131351028, %v156
    %v166 = vshrl.u32 2102212464, %v157
    %v167 = vor.u32 %v165, %v166
    %v168 = vshll.u32 2102212464, %v156
    %v169 = vshrl.u32 920167782, %v157
    %v170 = vor.u32 %v168, %v169
    %v171 = vshll.u32 920167782, %v156
    %v172 = vshrl.u32 1326507024, %v157
    %v173 = vor.u32 %v171, %v172
    %vm174 = vcmp.lt.s32.totalorder %v155, 1
    %vm175 = vcmp.lt.s32.totalorder %v155, 2
    %vm176 = vcmp.lt.s32.totalorder %v155, 3
    %vm177 = vcmp.lt.s32.totalorder %v155, 4
    %v178 = vsel %vm174, %v158, %v161
    %v179 = vsel %vm177, %v167, 2102212464
    %v180 = vsel %vm176, %v164, %v179
    %v181 = vsel %vm175, %v178, %v180
    %v182 = vsel %vm174, %v161, %v164
    %v183 = vsel %vm177, %v170, 920167782
    %v184 = vsel %vm176, %v167, %v183
    %v185 = vsel %vm175, %v182, %v184
    %v186 = vsel %vm174, %v164, %v167
    %v187 = vsel %vm177, %v173, 1326507024
    %v188 = vsel %vm176, %v170, %v187
    %v189 = vsel %vm175, %v186, %v188
    %v190 = vshll.u32 %v150, 8
    %v191 = vmul.u32.u64.compose %v190, %v189
    %v192 = vextract.low.u32 %v191
    %v193 = vextract.high.u32 %v191
    %v194 = vmul.u32.u64.compose %v190, %v185
    %v195 = vextract.low.u32 %v194
    %v196 = vextract.high.u32 %v194
    %v197 = vmul.u32 %v190, %v181
    %v198 = vadd.s32 %v193, %v195
    %vm199 = vc.u32 %v193, %v195
    %v200 = vadd.s32 %v196, 1
    %v201 = vsel %vm199, %v200, %v196
    %v202 = vadd.s32 %v197, %v201
    %v203 = vadd.s32 %v202, 536870912
    %v204 = vshrl.u32 %v203, 30
    %v205 = vshll.u32 %v204, 30
    %v206 = vsub.s32 %v202, %v205
    %vm207 = vcmp.lt.s32.totalorder %v206, 0
    %v208 = vsub.s32 0, %v206
    %v209 = vsel %vm207, %v208, %v206
    %v210 = vclz %v209
    %v211 = vsub.s32 %v210, 2
    %vm212 = vcmp.gt.s32.totalorder 0, %v211
    %v213 = vsel %vm212, 0, %v211
    %v214 = vsub.s32 32, %v213
    %v215 = vshll.u32 %v206, %v213
    %v216 = vshrl.u32 %v198, %v214
    %v217 = vor.u32 %v215, %v216
    %v218 = vsub.s32 4294967266, %v213
    %v219 = vadd.s32 %v218, 127
    %v220 = vshll.u32 %v219, 23
    %v221 = vor.u32 4788187, %v220
    %v222 = vand.u32 2147483647, %v221
    %v224 = vcvt.s32.f32 %v217
    %v225 = vmul.f32 %v224, %v222
    %v226 = vxor.u32 %v225, 2147483648
    %v227 = vsel %vm144, %v226, %v225
    %v228 = vsub.s32 4, %v204
    %v229 = vsel %vm144, %v228, %v204
    %v230 = vsel %vm143, %v137, %v227
    %v231 = vsel %vm143, 0, %v229
    %v232 = vcosq.f32.pop %v230
    %v233 = vsinq.f32.pop %v230
    %vm234 = vweird.f32 %v137
    %v235 = vadd.s32 %v231, 3
    %v236 = vand.u32 %v235, 3
    %vm237 = vcmp.lt.s32.totalorder %v236, 2
    %vm238 = vcmp.eq.s32.totalorder %v236, 0
    %v239 = vxor.u32 %v233, 2147483648
    %v240 = vsel %vm238, %v232, %v239
    %vm241 = vcmp.eq.s32.totalorder %v236, 2
    %v242 = vxor.u32 %v232, 2147483648
    %v243 = vsel %vm241, %v242, %v233
    %v244 = vsel %vm237, %v240, %v243
    %v245 = vsel %vm234, nan, %v244
    %246 = vst [vmem:[%s3] sm:$0xf] %v245
    // Predicated region
    $region18: #{odefunc_mlp.1} parent=1 // pred_check
      _
    $region19: #{odefunc_mlp.1} parent=1 // pred_check_branch
      %248 = sbr.rel (0) target = $region21
    $region20: #{odefunc_mlp.1} parent=1 // pred_region
      _
    $region21: #{odefunc_mlp.1} parent=1 // pred_fallthru
      _
    // Predicated region
    $region22: #{odefunc_mlp.1} parent=1 // pred_check
      _
    $region23: #{odefunc_mlp.1} parent=1 // pred_check_branch
      %250 = sbr.rel (0) target = $region25
    $region24: #{odefunc_mlp.1} parent=1 // pred_region
      _
    $region25: #{odefunc_mlp.1} parent=1 // pred_fallthru
      _
    %251 = vsyncpa [#allocation3], 1

</llo_original>
